<compile_context>
chip_gen: v5e
topology: v5e:2x2
jax: 0.10.0
libtpu: 0.0.40
codegen_flags: <defaults>
</compile_context>

<pallas_src>
import functools

import jax
import jax.numpy as jnp
from jax.experimental import pallas as pl
from jax.experimental.pallas import tpu as pltpu


def _kl_kernel(ys_ref, yt_ref, out_ref, ms_ref, mt_ref, ss_ref, st_ref, n_ref,
               *, inv_t):
    """One (batch_tile, class_tile) block of the online-softmax KL reduction.

    Carried per-row state (VMEM scratch, shape (batch_tile, 1), f32):
      ms, mt : running row max of y_s/T and y_t/T
      ss, st : running row sums of exp(a - ms), exp(b - mt)
      n      : running row sum of exp(b - mt) * (b - a)
    At the last class step:
      row_kl = n / st + (ms + log ss) - (mt + log st)
    """
    k = pl.program_id(1)
    nk = pl.num_programs(1)

    a = ys_ref[...].astype(jnp.float32) * inv_t   # student logits / T
    b = yt_ref[...].astype(jnp.float32) * inv_t   # teacher logits / T

    # chunk-local row maxima (computed before touching the carried state)
    ms_c = jnp.max(a, axis=1, keepdims=True)
    mt_c = jnp.max(b, axis=1, keepdims=True)

    @pl.when(k == 0)
    def _():
        ms_ref[...] = jnp.full_like(ms_ref, -jnp.inf)
        mt_ref[...] = jnp.full_like(mt_ref, -jnp.inf)
        ss_ref[...] = jnp.zeros_like(ss_ref)
        st_ref[...] = jnp.zeros_like(st_ref)
        n_ref[...] = jnp.zeros_like(n_ref)

    ms_new = jnp.maximum(ms_ref[...], ms_c)
    mt_new = jnp.maximum(mt_ref[...], mt_c)
    alpha_s = jnp.exp(ms_ref[...] - ms_new)   # 0 on the first step (exp(-inf))
    alpha_t = jnp.exp(mt_ref[...] - mt_new)

    # Per-element work: 3 subs, 2 exps (EUP), 1 mul.  Underflowed teacher
    # probabilities contribute exactly 0 (0 * finite), matching torch.kl_div.
    es = jnp.exp(a - ms_new)
    et = jnp.exp(b - mt_new)
    # TODO(synk): on v7x (compute-bound, bf16 inputs) these row sums could be
    # pushed onto the idle MXU via a ones((class_tile, 128)) matmul to free
    # VALU/XLU slots; kept on the vector path here for exact f32 accumulation.
    ss_ref[...] = alpha_s * ss_ref[...] + jnp.sum(es, axis=1, keepdims=True)
    st_ref[...] = alpha_t * st_ref[...] + jnp.sum(et, axis=1, keepdims=True)
    n_ref[...] = alpha_t * n_ref[...] + jnp.sum(et * (b - a), axis=1,
                                                keepdims=True)
    ms_ref[...] = ms_new
    mt_ref[...] = mt_new

    @pl.when(k == nk - 1)
    def _():
        lse_s = ms_ref[...] + jnp.log(ss_ref[...])
        lse_t = mt_ref[...] + jnp.log(st_ref[...])
        inv_st = pl.reciprocal(st_ref[...], approx=False)  # once per tile
        out_ref[...] = n_ref[...] * inv_st + (lse_s - lse_t)


def _vmem_capacity_bytes():
    """Physical per-core VMEM; conservative 64 MiB (v7x) fallback."""
    try:
        return int(pltpu.get_tpu_info().vmem_capacity_bytes)
    except Exception:
        return 64 * 1024 * 1024


def _sublane(itemsize):
    # sub-32-bit dtypes pack along sublanes: bf16 needs 16 rows, int8/fp8 32
    return {4: 8, 2: 16, 1: 32}.get(int(itemsize), 8)


def _pick_tiles(B, C, itemsize, target_elems):
    """Choose (batch_tile, class_tile): big blocks, grid>=2 on batch, C-tiling
    for vocab-scale class counts (only when C folds into 128-wide lanes)."""
    sub = _sublane(itemsize)

    b_divs = [d for d in range(sub, B + 1, sub) if B % d == 0] or [B]
    # keep at least two batch tiles whenever B permits (v7x: 2 TensorCores)
    b_cands = [d for d in b_divs if B // d >= 2] or b_divs

    # 1) single class block: largest batch tile whose (rows, C) block fits
    fits_single = [d for d in b_cands if d * C <= target_elems]
    if fits_single:
        return max(fits_single), C

    # 2) C too wide even for the smallest batch tile: tile the class axis
    #    (requires a multiple-of-128 divisor so blocks stay lane-aligned)
    if C % 128 == 0:
        small = [d for d in b_cands if d <= 256]
        b_tile = max(small) if small else min(b_cands)
        c_divs = [d for d in range(128, C, 128) if C % d == 0]
        fitting = [d for d in c_divs if b_tile * d <= target_elems]
        if fitting:
            return b_tile, max(fitting)
        if c_divs:
            return min(b_cands), min(c_divs)

    # 3) fallback: single class block with the smallest batch tile
    return min(b_cands), C


def output_kl(y_s, y_t, T, *, batch_tile=None, class_tile=None):
    """Pallas equivalent of output_kl(T).forward(y_s, y_t). Returns a scalar.

    Prefer passing bf16 logits: the kernel upcasts to f32 internally, so this
    halves HBM traffic (the dominant cost with f32 inputs on v5e/v6e) at only
    input-quantization-level numeric cost.
    """
    assert y_s.shape == y_t.shape and y_s.ndim == 2
    assert y_s.dtype == y_t.dtype
    B, C = y_s.shape
    itemsize = jnp.dtype(y_s.dtype).itemsize

    # Working-set model per grid step: 2 inputs x 2 pipeline buffers in the
    # input dtype + ~6 f32 block-sized temporaries.
    per_elem_bytes = 4 * itemsize + 6 * 4
    phys_vmem = _vmem_capacity_bytes()
    target_elems = max(64 * 1024,
                       min((phys_vmem * 45 // 100) // per_elem_bytes,
                           1024 * 1024))

    bt_auto, ct_auto = _pick_tiles(B, C, itemsize, target_elems)
    batch_tile = int(batch_tile) if batch_tile is not None else bt_auto
    class_tile = int(class_tile) if class_tile is not None else ct_auto

    assert B % batch_tile == 0, (B, batch_tile)
    assert C % class_tile == 0, (C, class_tile)
    if class_tile != C:
        assert class_tile % 128 == 0, "class_tile must be a multiple of 128"

    nb = B // batch_tile
    nk = C // class_tile

    # generation-aware VMEM budget: ~70% of physical, never above 64 MiB
    vmem_ceiling = min(int(phys_vmem * 0.7), 64 * 1024 * 1024)
    need = batch_tile * class_tile * per_elem_bytes + (2 << 20)
    if need > vmem_ceiling:
        raise ValueError(
            f"output_kl tile ({batch_tile}x{class_tile}) needs ~{need >> 20} "
            f"MiB VMEM which exceeds the {vmem_ceiling >> 20} MiB budget; "
            f"pass smaller batch_tile/class_tile.")
    vmem_limit = int(max(need, 4 * 1024 * 1024))

    kernel = functools.partial(_kl_kernel, inv_t=1.0 / float(T))

    row_kl = pl.pallas_call(
        kernel,
        out_shape=jax.ShapeDtypeStruct((B, 1), jnp.float32),
        grid_spec=pltpu.PrefetchScalarGridSpec(
            num_scalar_prefetch=0,
            grid=(nb, nk),
            in_specs=[
                pl.BlockSpec((batch_tile, class_tile), lambda i, k: (i, k)),
                pl.BlockSpec((batch_tile, class_tile), lambda i, k: (i, k)),
            ],
            out_specs=pl.BlockSpec((batch_tile, 1), lambda i, k: (i, 0)),
            scratch_shapes=[pltpu.VMEM((batch_tile, 1), jnp.float32)] * 5,
        ),
        compiler_params=pltpu.CompilerParams(
            dimension_semantics=("parallel", "arbitrary"),
            vmem_limit_bytes=vmem_limit,
        ),
    )(y_s, y_t)

    # single final reduction + 'batchmean' and T^2 distillation scaling
    return jnp.sum(row_kl) * (float(T) * float(T) / float(B))


def _reference(y_s, y_t, T):
    ls = jax.nn.log_softmax(y_s.astype(jnp.float32) / T, axis=1)
    pt = jax.nn.softmax(y_t.astype(jnp.float32) / T, axis=1)
    kl = jnp.sum(pt * (jnp.log(pt) - ls)) / y_s.shape[0]
    return kl * T * T


if __name__ == "__main__":
    key = jax.random.PRNGKey(0)
    k1, k2, k3, k4, k5, k6 = jax.random.split(key, 6)
    T = 4.0

    # 1) small single-tile case (batch=8, num_classes=128)
    B1, C1 = 8, 128
    ys1 = jax.random.normal(k1, (B1, C1), dtype=jnp.float32)
    yt1 = jax.random.normal(k2, (B1, C1), dtype=jnp.float32)
    out1 = jax.block_until_ready(output_kl(ys1, yt1, T))
    ref1 = _reference(ys1, yt1, T)
    assert jnp.allclose(out1, ref1, rtol=1e-4, atol=1e-6), (out1, ref1)

    # 2) multiple batch tiles on the parallel axis (explicit batch_tile)
    B2, C2 = 32, 256
    ys2 = jax.random.normal(k3, (B2, C2), dtype=jnp.float32)
    yt2 = jax.random.normal(k4, (B2, C2), dtype=jnp.float32)
    out2 = jax.block_until_ready(output_kl(ys2, yt2, T, batch_tile=8))
    ref2 = _reference(ys2, yt2, T)
    assert jnp.allclose(out2, ref2, rtol=1e-4, atol=1e-6), (out2, ref2)

    # 3) bf16 logits, auto tiling (16-row sublane-packed tiles, grid >= 2)
    ys2b = ys2.astype(jnp.bfloat16)
    yt2b = yt2.astype(jnp.bfloat16)
    out3 = jax.block_until_ready(output_kl(ys2b, yt2b, T))
    ref3 = _reference(ys2b, yt2b, T)
    assert jnp.allclose(out3, ref3, rtol=1e-3, atol=1e-5), (out3, ref3)

    # 4) class-tiled online-softmax path (class grid axis > 1)
    B3, C3 = 16, 512
    ys3 = jax.random.normal(k5, (B3, C3), dtype=jnp.float32)
    yt3 = jax.random.normal(k6, (B3, C3), dtype=jnp.float32)
    out4 = jax.block_until_ready(output_kl(ys3, yt3, T, batch_tile=8,
                                           class_tile=128))
    ref4 = _reference(ys3, yt3, T)
    assert jnp.allclose(out4, ref4, rtol=1e-4, atol=1e-6), (out4, ref4)

    print("KERNEL_OK")
</pallas_src>

<mosaic_0001>
module attributes {stable_mosaic.version = 11 : i64} {
  func.func @_kl_kernel(%arg0: i32, %arg1: i32, %arg2: memref<8x128xf32, #tpu.memory_space<vmem>>, %arg3: memref<8x128xf32, #tpu.memory_space<vmem>>, %arg4: memref<8x1xf32, #tpu.memory_space<vmem>>, %arg5: memref<8x1xf32, #tpu.memory_space<vmem>>, %arg6: memref<8x1xf32, #tpu.memory_space<vmem>>, %arg7: memref<8x1xf32, #tpu.memory_space<vmem>>, %arg8: memref<8x1xf32, #tpu.memory_space<vmem>>, %arg9: memref<8x1xf32, #tpu.memory_space<vmem>>) attributes {dimension_semantics = [#tpu.dimension_semantics<parallel>, #tpu.dimension_semantics<arbitrary>], iteration_bounds = array<i64: 1, 1>, scalar_prefetch = 0 : i64, scratch_operands = 5 : i64, tpu.core_type = #tpu.core_type<tc>, window_params = [{transform_indices = @transform_0, window_bounds = array<i64: 8, 128>}, {transform_indices = @transform_1, window_bounds = array<i64: 8, 128>}, {transform_indices = @transform_2, window_bounds = array<i64: 8, 1>}]} {
    %c0 = arith.constant 0 : index
    %c0_0 = arith.constant 0 : index
    %0 = vector.load %arg2[%c0, %c0_0] : memref<8x128xf32, #tpu.memory_space<vmem>>, vector<8x128xf32>
    %cst = arith.constant 2.500000e-01 : f32
    %1 = vector.broadcast %cst : f32 to vector<8x128xf32>
    %2 = arith.mulf %0, %1 : vector<8x128xf32>
    %c0_1 = arith.constant 0 : index
    %c0_2 = arith.constant 0 : index
    %3 = vector.load %arg3[%c0_1, %c0_2] : memref<8x128xf32, #tpu.memory_space<vmem>>, vector<8x128xf32>
    %cst_3 = arith.constant 2.500000e-01 : f32
    %4 = vector.broadcast %cst_3 : f32 to vector<8x128xf32>
    %5 = arith.mulf %3, %4 : vector<8x128xf32>
    %cst_4 = arith.constant dense<0xFF800000> : vector<8xf32>
    %6 = vector.multi_reduction <maximumf>, %2, %cst_4 [1] : vector<8x128xf32> to vector<8xf32>
    %7 = vector.shape_cast %6 : vector<8xf32> to vector<8x1xf32>
    %cst_5 = arith.constant dense<0xFF800000> : vector<8xf32>
    %8 = vector.multi_reduction <maximumf>, %5, %cst_5 [1] : vector<8x128xf32> to vector<8xf32>
    %9 = vector.shape_cast %8 : vector<8xf32> to vector<8x1xf32>
    %c0_i32 = arith.constant 0 : i32
    %10 = arith.cmpi eq, %arg1, %c0_i32 : i32
    %11 = arith.extui %10 : i1 to i32
    %c0_i32_6 = arith.constant 0 : i32
    %12 = arith.cmpi ne, %11, %c0_i32_6 : i32
    scf.if %12 {
      %cst_36 = arith.constant 0xFF800000 : f32
      %54 = vector.broadcast %cst_36 : f32 to vector<8x1xf32>
      %c0_37 = arith.constant 0 : index
      %c0_38 = arith.constant 0 : index
      %55 = vector.load %arg5[%c0_37, %c0_38] : memref<8x1xf32, #tpu.memory_space<vmem>>, vector<8x1xf32>
      tpu.vector_store %arg5[%c0_37, %c0_38], %54 {strides = array<i32>} : memref<8x1xf32, #tpu.memory_space<vmem>>, vector<8x1xf32>,
      %cst_39 = arith.constant 0xFF800000 : f32
      %56 = vector.broadcast %cst_39 : f32 to vector<8x1xf32>
      %c0_40 = arith.constant 0 : index
      %c0_41 = arith.constant 0 : index
      %57 = vector.load %arg6[%c0_40, %c0_41] : memref<8x1xf32, #tpu.memory_space<vmem>>, vector<8x1xf32>
      tpu.vector_store %arg6[%c0_40, %c0_41], %56 {strides = array<i32>} : memref<8x1xf32, #tpu.memory_space<vmem>>, vector<8x1xf32>,
      %cst_42 = arith.constant 0.000000e+00 : f32
      %58 = vector.broadcast %cst_42 : f32 to vector<8x1xf32>
      %c0_43 = arith.constant 0 : index
      %c0_44 = arith.constant 0 : index
      %59 = vector.load %arg7[%c0_43, %c0_44] : memref<8x1xf32, #tpu.memory_space<vmem>>, vector<8x1xf32>
      tpu.vector_store %arg7[%c0_43, %c0_44], %58 {strides = array<i32>} : memref<8x1xf32, #tpu.memory_space<vmem>>, vector<8x1xf32>,
      %cst_45 = arith.constant 0.000000e+00 : f32
      %60 = vector.broadcast %cst_45 : f32 to vector<8x1xf32>
      %c0_46 = arith.constant 0 : index
      %c0_47 = arith.constant 0 : index
      %61 = vector.load %arg8[%c0_46, %c0_47] : memref<8x1xf32, #tpu.memory_space<vmem>>, vector<8x1xf32>
      tpu.vector_store %arg8[%c0_46, %c0_47], %60 {strides = array<i32>} : memref<8x1xf32, #tpu.memory_space<vmem>>, vector<8x1xf32>,
      %cst_48 = arith.constant 0.000000e+00 : f32
      %62 = vector.broadcast %cst_48 : f32 to vector<8x1xf32>
      %c0_49 = arith.constant 0 : index
      %c0_50 = arith.constant 0 : index
      %63 = vector.load %arg9[%c0_49, %c0_50] : memref<8x1xf32, #tpu.memory_space<vmem>>, vector<8x1xf32>
      tpu.vector_store %arg9[%c0_49, %c0_50], %62 {strides = array<i32>} : memref<8x1xf32, #tpu.memory_space<vmem>>, vector<8x1xf32>,
    } else {
    }
    %c0_7 = arith.constant 0 : index
    %c0_8 = arith.constant 0 : index
    %13 = vector.load %arg5[%c0_7, %c0_8] : memref<8x1xf32, #tpu.memory_space<vmem>>, vector<8x1xf32>
    %14 = arith.maximumf %13, %7 : vector<8x1xf32>
    %c0_9 = arith.constant 0 : index
    %c0_10 = arith.constant 0 : index
    %15 = vector.load %arg6[%c0_9, %c0_10] : memref<8x1xf32, #tpu.memory_space<vmem>>, vector<8x1xf32>
    %16 = arith.maximumf %15, %9 : vector<8x1xf32>
    %c0_11 = arith.constant 0 : index
    %c0_12 = arith.constant 0 : index
    %17 = vector.load %arg5[%c0_11, %c0_12] : memref<8x1xf32, #tpu.memory_space<vmem>>, vector<8x1xf32>
    %18 = arith.subf %17, %14 : vector<8x1xf32>
    %19 = math.exp %18 : vector<8x1xf32>
    %c0_13 = arith.constant 0 : index
    %c0_14 = arith.constant 0 : index
    %20 = vector.load %arg6[%c0_13, %c0_14] : memref<8x1xf32, #tpu.memory_space<vmem>>, vector<8x1xf32>
    %21 = arith.subf %20, %16 : vector<8x1xf32>
    %22 = math.exp %21 : vector<8x1xf32>
    %23 = vector.broadcast %14 : vector<8x1xf32> to vector<8x128xf32>
    %24 = arith.subf %2, %23 : vector<8x128xf32>
    %25 = math.exp %24 : vector<8x128xf32>
    %26 = vector.broadcast %16 : vector<8x1xf32> to vector<8x128xf32>
    %27 = arith.subf %5, %26 : vector<8x128xf32>
    %28 = math.exp %27 : vector<8x128xf32>
    %c0_15 = arith.constant 0 : index
    %c0_16 = arith.constant 0 : index
    %29 = vector.load %arg7[%c0_15, %c0_16] : memref<8x1xf32, #tpu.memory_space<vmem>>, vector<8x1xf32>
    %30 = arith.mulf %19, %29 : vector<8x1xf32>
    %cst_17 = arith.constant dense<0.000000e+00> : vector<8xf32>
    %31 = vector.multi_reduction <add>, %25, %cst_17 [1] : vector<8x128xf32> to vector<8xf32>
    %32 = vector.shape_cast %31 : vector<8xf32> to vector<8x1xf32>
    %33 = arith.addf %30, %32 : vector<8x1xf32>
    %c0_18 = arith.constant 0 : index
    %c0_19 = arith.constant 0 : index
    %34 = vector.load %arg7[%c0_18, %c0_19] : memref<8x1xf32, #tpu.memory_space<vmem>>, vector<8x1xf32>
    tpu.vector_store %arg7[%c0_18, %c0_19], %33 {strides = array<i32>} : memref<8x1xf32, #tpu.memory_space<vmem>>, vector<8x1xf32>,
    %c0_20 = arith.constant 0 : index
    %c0_21 = arith.constant 0 : index
    %35 = vector.load %arg8[%c0_20, %c0_21] : memref<8x1xf32, #tpu.memory_space<vmem>>, vector<8x1xf32>
    %36 = arith.mulf %22, %35 : vector<8x1xf32>
    %cst_22 = arith.constant dense<0.000000e+00> : vector<8xf32>
    %37 = vector.multi_reduction <add>, %28, %cst_22 [1] : vector<8x128xf32> to vector<8xf32>
    %38 = vector.shape_cast %37 : vector<8xf32> to vector<8x1xf32>
    %39 = arith.addf %36, %38 : vector<8x1xf32>
    %c0_23 = arith.constant 0 : index
    %c0_24 = arith.constant 0 : index
    %40 = vector.load %arg8[%c0_23, %c0_24] : memref<8x1xf32, #tpu.memory_space<vmem>>, vector<8x1xf32>
    tpu.vector_store %arg8[%c0_23, %c0_24], %39 {strides = array<i32>} : memref<8x1xf32, #tpu.memory_space<vmem>>, vector<8x1xf32>,
    %c0_25 = arith.constant 0 : index
    %c0_26 = arith.constant 0 : index
    %41 = vector.load %arg9[%c0_25, %c0_26] : memref<8x1xf32, #tpu.memory_space<vmem>>, vector<8x1xf32>
    %42 = arith.mulf %22, %41 : vector<8x1xf32>
    %43 = arith.subf %5, %2 : vector<8x128xf32>
    %44 = arith.mulf %28, %43 : vector<8x128xf32>
    %cst_27 = arith.constant dense<0.000000e+00> : vector<8xf32>
    %45 = vector.multi_reduction <add>, %44, %cst_27 [1] : vector<8x128xf32> to vector<8xf32>
    %46 = vector.shape_cast %45 : vector<8xf32> to vector<8x1xf32>
    %47 = arith.addf %42, %46 : vector<8x1xf32>
    %c0_28 = arith.constant 0 : index
    %c0_29 = arith.constant 0 : index
    %48 = vector.load %arg9[%c0_28, %c0_29] : memref<8x1xf32, #tpu.memory_space<vmem>>, vector<8x1xf32>
    tpu.vector_store %arg9[%c0_28, %c0_29], %47 {strides = array<i32>} : memref<8x1xf32, #tpu.memory_space<vmem>>, vector<8x1xf32>,
    %c0_30 = arith.constant 0 : index
    %c0_31 = arith.constant 0 : index
    %49 = vector.load %arg5[%c0_30, %c0_31] : memref<8x1xf32, #tpu.memory_space<vmem>>, vector<8x1xf32>
    tpu.vector_store %arg5[%c0_30, %c0_31], %14 {strides = array<i32>} : memref<8x1xf32, #tpu.memory_space<vmem>>, vector<8x1xf32>,
    %c0_32 = arith.constant 0 : index
    %c0_33 = arith.constant 0 : index
    %50 = vector.load %arg6[%c0_32, %c0_33] : memref<8x1xf32, #tpu.memory_space<vmem>>, vector<8x1xf32>
    tpu.vector_store %arg6[%c0_32, %c0_33], %16 {strides = array<i32>} : memref<8x1xf32, #tpu.memory_space<vmem>>, vector<8x1xf32>,
    %c0_i32_34 = arith.constant 0 : i32
    %51 = arith.cmpi eq, %arg1, %c0_i32_34 : i32
    %52 = arith.extui %51 : i1 to i32
    %c0_i32_35 = arith.constant 0 : i32
    %53 = arith.cmpi ne, %52, %c0_i32_35 : i32
    scf.if %53 {
      %c0_36 = arith.constant 0 : index
      %c0_37 = arith.constant 0 : index
      %54 = vector.load %arg5[%c0_36, %c0_37] : memref<8x1xf32, #tpu.memory_space<vmem>>, vector<8x1xf32>
      %c0_38 = arith.constant 0 : index
      %c0_39 = arith.constant 0 : index
      %55 = vector.load %arg7[%c0_38, %c0_39] : memref<8x1xf32, #tpu.memory_space<vmem>>, vector<8x1xf32>
      %56 = math.log %55 : vector<8x1xf32>
      %57 = arith.addf %54, %56 : vector<8x1xf32>
      %c0_40 = arith.constant 0 : index
      %c0_41 = arith.constant 0 : index
      %58 = vector.load %arg6[%c0_40, %c0_41] : memref<8x1xf32, #tpu.memory_space<vmem>>, vector<8x1xf32>
      %c0_42 = arith.constant 0 : index
      %c0_43 = arith.constant 0 : index
      %59 = vector.load %arg8[%c0_42, %c0_43] : memref<8x1xf32, #tpu.memory_space<vmem>>, vector<8x1xf32>
      %60 = math.log %59 : vector<8x1xf32>
      %61 = arith.addf %58, %60 : vector<8x1xf32>
      %c0_44 = arith.constant 0 : index
      %c0_45 = arith.constant 0 : index
      %62 = vector.load %arg8[%c0_44, %c0_45] : memref<8x1xf32, #tpu.memory_space<vmem>>, vector<8x1xf32>
      %63 = tpu.reciprocal %62 : vector<8x1xf32> -> vector<8x1xf32>
      %c0_46 = arith.constant 0 : index
      %c0_47 = arith.constant 0 : index
      %64 = vector.load %arg9[%c0_46, %c0_47] : memref<8x1xf32, #tpu.memory_space<vmem>>, vector<8x1xf32>
      %65 = arith.mulf %64, %63 : vector<8x1xf32>
      %66 = arith.subf %57, %61 : vector<8x1xf32>
      %67 = arith.addf %65, %66 : vector<8x1xf32>
      %c0_48 = arith.constant 0 : index
      %c0_49 = arith.constant 0 : index
      %68 = vector.load %arg4[%c0_48, %c0_49] : memref<8x1xf32, #tpu.memory_space<vmem>>, vector<8x1xf32>
      tpu.vector_store %arg4[%c0_48, %c0_49], %67 {strides = array<i32>} : memref<8x1xf32, #tpu.memory_space<vmem>>, vector<8x1xf32>,
    } else {
    }
    return
  }
  func.func @transform_0(%arg0: i32, %arg1: i32) -> (i32, i32) {
    %c0_i32 = arith.constant 0 : i32
    return %arg0, %arg1 : i32, i32
  }
  func.func @transform_1(%arg0: i32, %arg1: i32) -> (i32, i32) {
    %c0_i32 = arith.constant 0 : i32
    return %arg0, %arg1 : i32, i32
  }
  func.func @transform_2(%arg0: i32, %arg1: i32) -> (i32, i32) {
    %c0_i32 = arith.constant 0 : i32
    %c0_i32_0 = arith.constant 0 : i32
    return %arg0, %c0_i32 : i32, i32
  }
}

</mosaic_0001>

<llo_original>
// kernel: tpu_custom_call.1
$region0: #{tpu_custom_call.1}
  #allocation0 [shape = 'u32[]', space=smem, size = 0x4, offset = 0x4, fixed_abs, tag = 'smem constant byte address 0x4 - core index']
  #allocation1 [shape = 'u32[72,128]{1,0:T(1,128)}', space=vmem, size = 0x9000, scoped, tag = 'internal scratch']
  #allocation2 [shape = 'f32[8,1]{1,0:T(8,128)}', space=vmem, size = 0x1000, scoped, tag = 'scratch operand']
  #allocation3 [shape = 'f32[8,1]{1,0:T(8,128)}', space=vmem, size = 0x1000, scoped, tag = 'scratch operand']
  #allocation4 [shape = 'f32[8,1]{1,0:T(8,128)}', space=vmem, size = 0x1000, scoped, tag = 'scratch operand']
  #allocation5 [shape = 'f32[8,1]{1,0:T(8,128)}', space=vmem, size = 0x1000, scoped, tag = 'scratch operand']
  #allocation6 [shape = 'f32[8,1]{1,0:T(8,128)}', space=vmem, size = 0x1000, scoped, tag = 'scratch operand']
  %s0 = inlined_call_operand.hbm [shape: f32[8,128], index: 0, kind: input, shape index: {}]
  %s1 = inlined_call_operand.hbm [shape: f32[8,128], index: 1, kind: input, shape index: {}]
  %s2 = inlined_call_operand.vmem [shape: f32[8,1], index: 2, kind: output, shape index: {}]
  %s3 = sld [smem:[#allocation0]]
  $region34: #{tpu_custom_call.1} parent=0
    _
  %s5 = ssub.s32 1, %s3
  %s6 = scalar_select 0, %s5, %s3
  $region1: #{tpu_custom_call.1} parent=0
    #allocation7 [shape = 'u8[4096]{0}', space=vmem, size = 0x1000, scoped, tag = 'input window, operand 0, single buffered']
    #allocation8 [shape = 's32[1]{0}', space=sflag, size = 0x4, scoped, tag = 'scoped memory for tpu_custom_call.1']
    #allocation9 [shape = 'u8[4096]{0}', space=vmem, size = 0x1000, scoped, tag = 'input window, operand 1, single buffered']
    #allocation10 [shape = 's32[1]{0}', space=sflag, size = 0x4, scoped, tag = 'scoped memory for tpu_custom_call.1']
    %7 = vsyncpa [#allocation8], 0
    %8 = vsyncpa [#allocation10], 0
    // Predicated region
    $region2: #{tpu_custom_call.1} parent=1 // pred_check
      _
    $region3: #{tpu_custom_call.1} parent=1 // pred_check_branch
      %10 = sbr.rel (0) target = $region5
    $region4: #{tpu_custom_call.1} parent=1 // pred_region
      %12 = vsyncadd [#allocation8], 0
      %s14 = sshll.u32 %s0, 4
      %s15 = int_to_ptr.hbm [resolvable:$true] %s14
      %s16 = sshll.u32 [#allocation7], 4
      %s17 = int_to_ptr.vmem [resolvable:$true] %s16
      %19 = dma.hbm_to_vmem [thread:$0]  %s15, 128, %s17, [#allocation8]
    $region5: #{tpu_custom_call.1} parent=1 // pred_fallthru
      _
    // Predicated region
    $region6: #{tpu_custom_call.1} parent=1 // pred_check
      _
    $region7: #{tpu_custom_call.1} parent=1 // pred_check_branch
      %21 = sbr.rel (0) target = $region9
    $region8: #{tpu_custom_call.1} parent=1 // pred_region
      %23 = vsyncadd [#allocation10], 0
      %s25 = sshll.u32 %s1, 4
      %s26 = int_to_ptr.hbm [resolvable:$true] %s25
      %s27 = sshll.u32 [#allocation9], 4
      %s28 = int_to_ptr.vmem [resolvable:$true] %s27
      %30 = dma.hbm_to_vmem [thread:$0]  %s26, 128, %s28, [#allocation10]
    $region9: #{tpu_custom_call.1} parent=1 // pred_fallthru
      _
    // Predicated region
    $region10: #{tpu_custom_call.1} parent=1 // pred_check
      _
    $region11: #{tpu_custom_call.1} parent=1 // pred_check_branch
      %32 = sbr.rel (0) target = $region13
    $region12: #{tpu_custom_call.1} parent=1 // pred_region
      %34 = dma.done [#allocation8], 128
    $region13: #{tpu_custom_call.1} parent=1 // pred_fallthru
      _
    // Predicated region
    $region14: #{tpu_custom_call.1} parent=1 // pred_check
      _
    $region15: #{tpu_custom_call.1} parent=1 // pred_check_branch
      %36 = sbr.rel (0) target = $region17
    $region16: #{tpu_custom_call.1} parent=1 // pred_region
      %38 = dma.done [#allocation10], 128
    $region17: #{tpu_custom_call.1} parent=1 // pred_fallthru
      _
    %v39 = vld [vmem:[#allocation7] sm:$0xff]
    %v40 = vmul.f32 %v39, 0.25
    %v41 = vld [vmem:[#allocation9] sm:$0xff]
    %v42 = vmul.f32 %v41, 0.25
    %43 = vmax.xlane.f32.xlu0 %v40
    %v44 = vpop.xlane.xlu0 %43
    %45 = vmax.xlane.f32.xlu0 %v42
    %v46 = vpop.xlane.xlu0 %45
    %p47 = scmp.eq.s32.totalorder 0, 0
    // Predicated region
    $region18: #{tpu_custom_call.1} parent=1 // pred_check
      %p48 = pneg %p47
    $region19: #{tpu_custom_call.1} parent=1 // pred_check_branch
      %50 = sbr.rel (%p48) target = $region21
    $region20: #{tpu_custom_call.1} parent=1 // pred_region
      %vm51 = vcmask 7168
      %52 = vst.msk [vmem:[#allocation2] sm:$0xff] %vm51, -inf
      %53 = vst.msk [vmem:[#allocation3] sm:$0xff] %vm51, -inf
      %54 = vst.msk [vmem:[#allocation4] sm:$0xff] %vm51, 0.0
      %55 = vst.msk [vmem:[#allocation5] sm:$0xff] %vm51, 0.0
      %56 = vst.msk [vmem:[#allocation6] sm:$0xff] %vm51, 0.0
    $region21: #{tpu_custom_call.1} parent=1 // pred_fallthru
      _
    %v57 = vld [vmem:[#allocation2] sm:$0xff]
    %v58 = vmax.f32 %v57, %v44
    %v59 = vld [vmem:[#allocation3] sm:$0xff]
    %v60 = vmax.f32 %v59, %v46
    %v61 = vsub.f32 %v57, %v58
    %v62 = vmul.f32 %v61, 1.442695
    %v63 = vpow.pop %v62
    %v64 = vsub.f32 %v59, %v60
    %v65 = vmul.f32 %v64, 1.442695
    %v66 = vpow.pop %v65
    %68 = vset.pattern.permute.xlu0 0
    %69 = vperm.xlu0 %68, %v58
    %v70 = vpop.permute.xlu0 %69
    %v72 = vsub.f32 %v40, %v70
    %v73 = vmul.f32 %v72, 1.442695
    %v74 = vpow.pop %v73
    %76 = vset.pattern.permute.xlu0 0
    %77 = vperm.xlu0 %76, %v60
    %v78 = vpop.permute.xlu0 %77
    %v80 = vsub.f32 %v42, %v78
    %v81 = vmul.f32 %v80, 1.442695
    %v82 = vpow.pop %v81
    %v83 = vld [vmem:[#allocation4] sm:$0xff]
    %v84 = vmul.f32 %v63, %v83
    %85 = vadd.xlane.f32.xlu0 %v74
    %v86 = vpop.xlane.xlu0 %85
    %v87 = vadd.f32 %v84, %v86
    %vm88 = vcmask 7168
    %89 = vst.msk [vmem:[#allocation4] sm:$0xff] %vm88, %v87
    %v90 = vld [vmem:[#allocation5] sm:$0xff]
    %v91 = vmul.f32 %v66, %v90
    %92 = vadd.xlane.f32.xlu0 %v82
    %v93 = vpop.xlane.xlu0 %92
    %v94 = vadd.f32 %v91, %v93
    %95 = vst.msk [vmem:[#allocation5] sm:$0xff] %vm88, %v94
    %v96 = vld [vmem:[#allocation6] sm:$0xff]
    %v97 = vmul.f32 %v66, %v96
    %v98 = vsub.f32 %v42, %v40
    %v99 = vmul.f32 %v82, %v98
    %100 = vadd.xlane.f32.xlu0 %v99
    %v101 = vpop.xlane.xlu0 %100
    %v102 = vadd.f32 %v97, %v101
    %103 = vst.msk [vmem:[#allocation6] sm:$0xff] %vm88, %v102
    %104 = vst.msk [vmem:[#allocation2] sm:$0xff] %vm88, %v58
    %105 = vst.msk [vmem:[#allocation3] sm:$0xff] %vm88, %v60
    // Predicated region
    $region22: #{tpu_custom_call.1} parent=1 // pred_check
      %p106 = pneg %p47
    $region23: #{tpu_custom_call.1} parent=1 // pred_check_branch
      %108 = sbr.rel (%p106) target = $region25
    $region24: #{tpu_custom_call.1} parent=1 // pred_region
      %v109 = vld [vmem:[#allocation2] sm:$0xff]
      %v110 = vld [vmem:[#allocation4] sm:$0xff]
      %v111 = vlog2.pop %v110
      %v112 = vmul.f32 %v111, 0.6931472
      %v113 = vadd.f32 %v109, %v112
      %v114 = vld [vmem:[#allocation3] sm:$0xff]
      %v115 = vld [vmem:[#allocation5] sm:$0xff]
      %v116 = vlog2.pop %v115
      %v117 = vmul.f32 %v116, 0.6931472
      %v118 = vadd.f32 %v114, %v117
      %v119 = vrcp.pop %v115
      %v120 = vmul.f32 %v115, %v119
      %v121 = vsub.f32 1.0, %v120
      %v122 = vmul.f32 %v119, %v121
      %v123 = vadd.f32 %v119, %v122
      %vm124 = vweird.f32 %v115
      %vm125 = vweird.f32 %v119
      %vm126 = vmor %vm124, %vm125
      %v127 = vsel %vm126, %v119, %v123
      %v128 = vand.u32 2147483647, %v115
      %vm129 = vcmp.eq.f32.partialorder %v128, 8.507059e+37
      %v130 = vand.u32 %v115, 2147483648
      %v131 = vor.u32 1.1754944e-38, %v130
      %v132 = vsel %vm129, %v131, %v127
      %v133 = vld [vmem:[#allocation6] sm:$0xff]
      %v134 = vmul.f32 %v133, %v132
      %v135 = vsub.f32 %v113, %v118
      %v136 = vadd.f32 %v134, %v135
      %137 = vst.msk [vmem:[%s2] sm:$0xff] %vm88, %v136
    $region25: #{tpu_custom_call.1} parent=1 // pred_fallthru
      _
    // Predicated region
    $region26: #{tpu_custom_call.1} parent=1 // pred_check
      _
    $region27: #{tpu_custom_call.1} parent=1 // pred_check_branch
      %139 = sbr.rel (0) target = $region29
    $region28: #{tpu_custom_call.1} parent=1 // pred_region
      _
    $region29: #{tpu_custom_call.1} parent=1 // pred_fallthru
      _
    // Predicated region
    $region30: #{tpu_custom_call.1} parent=1 // pred_check
      _
    $region31: #{tpu_custom_call.1} parent=1 // pred_check_branch
      %141 = sbr.rel (0) target = $region33
    $region32: #{tpu_custom_call.1} parent=1 // pred_region
      _
    $region33: #{tpu_custom_call.1} parent=1 // pred_fallthru
      _
    %142 = vsyncpa [#allocation8], 1
    %143 = vsyncpa [#allocation10], 1

</llo_original>
